<compile_context>
chip_gen: v7x
topology: tpu7x:2x2x1
jax: 0.10.0
libtpu: 0.0.40
codegen_flags: <defaults>
</compile_context>

<pallas_src>
import functools

import jax
import jax.numpy as jnp
from jax.experimental import pallas as pl
from jax.experimental.pallas import tpu as pltpu

EPS = 1e-5  # PyTorch InstanceNorm2d default


def _residual_block_kernel(x_ref, t_ref, sel_ref, aff_ref, out_ref, pad_ref,
                           *, H, nb, inv_hw):
    """One grid step: nb lane-packed groups -> conv / IN / ReLU / conv / IN + residual.

    x_ref  : (nb, H, WCp)      f32   lane-packed input images
    t_ref  : (6, WCp, WCp)     bf16  block-diag Toeplitz taps (conv1: 0..2, conv2: 3..5)
    sel_ref: (WCp, WCp)        f32   per-(image, channel) reduce/broadcast selector
    aff_ref: (4, WCp)          f32   [gamma1, beta1, gamma2, beta2] folded to lane layout
    out_ref: (nb, H, WCp)      f32
    pad_ref: (nb*(H+2), WCp)   f32   stacked zero-padded (in H) activations
    """
    WCp = pad_ref.shape[1]
    R = nb * (H + 2)          # total pad rows for this step
    M = R - 2                 # conv output rows (includes 2 garbage rows per group boundary)

    zrow = jnp.zeros((1, WCp), jnp.float32)

    def conv3x3_all(k):
        # One cast of the whole stacked buffer per conv, then one accumulated MXU matmul per
        # kernel row covering ALL nb groups at once (bf16 operands, f32 accumulation).
        xp = pad_ref[...].astype(jnp.bfloat16)                               # (R, WCp)
        acc = jnp.dot(xp[0:M, :], t_ref[k], preferred_element_type=jnp.float32)
        acc = acc + jnp.dot(xp[1:M + 1, :], t_ref[k + 1],
                            preferred_element_type=jnp.float32)
        acc = acc + jnp.dot(xp[2:M + 2, :], t_ref[k + 2],
                            preferred_element_type=jnp.float32)
        return acc            # (M, WCp) f32; group g's valid rows at [g*(H+2), g*(H+2)+H)

    def instance_norm(acc_g, gamma, beta):
        # One-pass stats (var = E[x^2] - mean^2).  The block-diagonal selector matmul reduces
        # over W within each packed image and broadcasts the per-channel stats back to lanes.
        s1 = jnp.sum(acc_g, axis=0, keepdims=True)                           # (1, WCp)
        s2 = jnp.sum(acc_g * acc_g, axis=0, keepdims=True)                   # (1, WCp)
        stats = jnp.dot(jnp.concatenate([s1, s2], axis=0), sel_ref[...],
                        preferred_element_type=jnp.float32) * inv_hw         # (2, WCp)
        mean = stats[0:1, :]
        var = jnp.maximum(stats[1:2, :] - mean * mean, 0.0)
        scale = gamma * jax.lax.rsqrt(var + EPS)
        shift = beta - mean * scale
        return acc_g * scale + shift

    g1 = aff_ref[0:1, :]
    b1 = aff_ref[1:2, :]
    g2 = aff_ref[2:3, :]
    b2 = aff_ref[3:4, :]

    # Stage inputs into the pad scratch.  Only the halo rows are zeroed, every grid step
    # (cheap), because with dimension_semantics=("parallel",) each TensorCore owns its own
    # scratch instance and the interior is overwritten per group anyway.
    for g in range(nb):
        base = g * (H + 2)
        pad_ref[base:base + 1, :] = zrow
        pad_ref[base + H + 1:base + H + 2, :] = zrow
        pad_ref[base + 1:base + 1 + H, :] = x_ref[g]

    # Conv1 (batched over all groups) -> per-group InstanceNorm + ReLU back into the scratch.
    acc1 = conv3x3_all(0)
    for g in range(nb):
        base = g * (H + 2)
        y = instance_norm(acc1[base:base + H, :], g1, b1)
        y = jnp.maximum(y, 0.0)                                              # ReLU
        pad_ref[base + 1:base + 1 + H, :] = y

    # Conv2 (batched) -> per-group InstanceNorm -> residual add, lane-dense (WCp-wide) store.
    acc2 = conv3x3_all(3)
    for g in range(nb):
        base = g * (H + 2)
        h = instance_norm(acc2[base:base + H, :], g2, b2)
        out_ref[g] = (x_ref[g] + h).astype(out_ref.dtype)


def _build_toeplitz(w_hwio, W):
    """(3, 3, Cin, Cout) conv weight -> (3, W*Cin, W*Cout) block-Toeplitz matrices.

    T[dy][p*C + ci, w*C + co] = w_hwio[dy, p - w + 1, ci, co] if 0 <= p - w + 1 <= 2 else 0,
    so `pad_rows[h + dy, :] @ T[dy]` summed over dy is the 3x3 conv with zero padding in W
    folded into the band structure (no W halo needed in the data).
    """
    C = w_hwio.shape[2]
    p = jnp.arange(W)[:, None]                       # input column
    q = jnp.arange(W)[None, :]                       # output column
    dx = p - q + 1                                   # (W, W)
    valid = ((dx >= 0) & (dx <= 2)).astype(w_hwio.dtype)
    t = w_hwio[:, jnp.clip(dx, 0, 2), :, :] * valid[None, :, :, None, None]  # (3, W, W, C, C)
    return jnp.transpose(t, (0, 1, 3, 2, 4)).reshape(3, W * C, W * C)


def _device_kind():
    try:
        return jax.devices()[0].device_kind.lower()
    except Exception:
        return ""


def _choose_lane_pack(N, kind):
    # 128 lanes is the hard target on <=v5 (128-wide MXU, 1 vst slot); v6e/v7x (2x256 MXU)
    # can profitably pack 4 images (256 lanes) when the batch size allows.
    max_pack = 4 if ("v6" in kind or "v7" in kind) else 2
    return next(p for p in (max_pack, 2, 1) if N % p == 0)


def _choose_groups_per_step(G, kind):
    # v7x has 2 TensorCores: keep >=2 grid steps so "parallel" has something to shard.
    # Single-TC chips (v5e/v6e) prefer few, big steps (~0.35 us fixed cost per step).
    num_tc = 2 if "v7" in kind else 1
    max_nb = 8
    for cand in range(min(G, max_nb), 0, -1):
        if G % cand == 0 and (G // cand) >= num_tc:
            return cand
    return 1


def residual_block(x_nchw, w1, g1, b1, w2, g2, b2, *,
                   lane_pack=None, groups_per_step=None):
    """x_nchw: (N, C, H, W); conv weights in PyTorch OIHW layout (Cout, Cin, 3, 3)."""
    N, C, H, W = x_nchw.shape
    WC = W * C
    kind = _device_kind()

    P = lane_pack if lane_pack is not None else _choose_lane_pack(N, kind)
    assert N % P == 0, "batch must be divisible by the lane packing factor"
    G = N // P
    WCp = P * WC

    nb = groups_per_step if groups_per_step is not None else _choose_groups_per_step(G, kind)
    assert G % nb == 0, "packed-group count must be divisible by groups_per_step"

    # Pack P images along the lane axis (image-major): (N, C, H, W) -> (G, H, P*W*C).
    x_f = jnp.transpose(x_nchw, (0, 2, 3, 1)).astype(jnp.float32).reshape(N, H, WC)
    x_p = x_f.reshape(G, P, H, WC).transpose(0, 2, 1, 3).reshape(G, H, WCp)

    # Conv weights -> block-Toeplitz, expanded to block-diagonal over the packed images,
    # both convs merged into one (6, WCp, WCp) bf16 operand (accumulation stays f32).
    eye_p = jnp.eye(P, dtype=jnp.float32)

    def taps(w_oihw):
        w_hwio = jnp.transpose(w_oihw, (2, 3, 1, 0)).astype(jnp.float32)     # (3,3,Cin,Cout)
        t = _build_toeplitz(w_hwio, W)                                       # (3, WC, WC)
        return jnp.stack([jnp.kron(eye_p, t[d]) for d in range(3)])          # (3, WCp, WCp)

    t_all = jnp.concatenate([taps(w1), taps(w2)], axis=0).astype(jnp.bfloat16)

    # Per-(image, channel) selector: block-diag over packed images of tile(eye(C), (W, W)).
    sel = jnp.kron(eye_p, jnp.tile(jnp.eye(C, dtype=jnp.float32), (W, W)))   # (WCp, WCp)

    # InstanceNorm affine params folded to the packed (1, WCp) lane layout, merged into one
    # (4, WCp) operand: rows = [gamma1, beta1, gamma2, beta2].
    def fold(v):
        return jnp.tile(v.reshape(1, C).astype(jnp.float32), (1, P * W))

    aff = jnp.concatenate([fold(g1), fold(b1), fold(g2), fold(b2)], axis=0)

    kernel = functools.partial(_residual_block_kernel,
                               H=H, nb=nb, inv_hw=1.0 / float(H * W))

    out_p = pl.pallas_call(
        kernel,
        out_shape=jax.ShapeDtypeStruct((G, H, WCp), jnp.float32),
        grid_spec=pltpu.PrefetchScalarGridSpec(
            num_scalar_prefetch=0,
            grid=(G // nb,),
            in_specs=[
                pl.BlockSpec((nb, H, WCp), lambda n: (n, 0, 0)),     # packed images
                pl.BlockSpec((6, WCp, WCp), lambda n: (0, 0, 0)),    # Toeplitz taps (both convs)
                pl.BlockSpec((WCp, WCp), lambda n: (0, 0)),          # channel selector
                pl.BlockSpec((4, WCp), lambda n: (0, 0)),            # affine params
            ],
            out_specs=pl.BlockSpec((nb, H, WCp), lambda n: (n, 0, 0)),
            scratch_shapes=[pltpu.VMEM((nb * (H + 2), WCp), jnp.float32)],  # stacked pad rows
        ),
        compiler_params=pltpu.CompilerParams(dimension_semantics=("parallel",)),
    )(x_p, t_all, sel, aff)

    # Unpack lanes back to (N, C, H, W).
    out = out_p.reshape(G, H, P, WC).transpose(0, 2, 1, 3).reshape(N, H, W, C)
    return jnp.transpose(out, (0, 3, 1, 2))


def _ref_forward(x, w1, g1, b1, w2, g2, b2):
    """Pure-JAX reference mirroring the PyTorch module (train-mode InstanceNorm)."""
    def conv(inp, w):
        return jax.lax.conv_general_dilated(
            inp, w, window_strides=(1, 1), padding=((1, 1), (1, 1)),
            dimension_numbers=("NCHW", "OIHW", "NCHW"))

    def inorm(y, g, b):
        mean = jnp.mean(y, axis=(2, 3), keepdims=True)
        var = jnp.mean((y - mean) ** 2, axis=(2, 3), keepdims=True)
        yn = (y - mean) * jax.lax.rsqrt(var + EPS)
        return yn * g.reshape(1, -1, 1, 1) + b.reshape(1, -1, 1, 1)

    h = conv(x, w1)
    h = inorm(h, g1, b1)
    h = jnp.maximum(h, 0.0)
    h = conv(h, w2)
    h = inorm(h, g2, b2)
    return x + h


if __name__ == "__main__":
    # ResidualBlock(dim_in=4, dim_out=4); residual requires dim_in == dim_out.
    N, C, H, W = 2, 4, 16, 16

    key = jax.random.PRNGKey(0)
    kx, kw1, kw2, kg1, kb1, kg2, kb2 = jax.random.split(key, 7)

    x = jax.random.normal(kx, (N, C, H, W), jnp.float32)
    w1 = 0.1 * jax.random.normal(kw1, (C, C, 3, 3), jnp.float32)   # OIHW
    w2 = 0.1 * jax.random.normal(kw2, (C, C, 3, 3), jnp.float32)   # OIHW
    g1 = 1.0 + 0.1 * jax.random.normal(kg1, (C,), jnp.float32)     # InstanceNorm weight
    b1 = 0.1 * jax.random.normal(kb1, (C,), jnp.float32)           # InstanceNorm bias
    g2 = 1.0 + 0.1 * jax.random.normal(kg2, (C,), jnp.float32)
    b2 = 0.1 * jax.random.normal(kb2, (C,), jnp.float32)

    out = residual_block(x, w1, g1, b1, w2, g2, b2)
    out = jax.block_until_ready(out)

    ref = _ref_forward(x, w1, g1, b1, w2, g2, b2)
    # Tolerance covers bf16 MXU operands (f32 accumulation); f32 reference drift is ~1e-2 max.
    if not jnp.allclose(out, ref, atol=3e-2, rtol=3e-2):
        raise AssertionError(
            f"mismatch: max abs err = {float(jnp.max(jnp.abs(out - ref)))}")

    print("KERNEL_OK")
</pallas_src>

<mosaic_0001>
module attributes {stable_mosaic.version = 11 : i64} {
  func.func @_residual_block_kernel(%arg0: i32, %arg1: memref<1x16x128xf32, #tpu.memory_space<vmem>>, %arg2: memref<6x128x128xbf16, #tpu.memory_space<vmem>>, %arg3: memref<128x128xf32, #tpu.memory_space<vmem>>, %arg4: memref<4x128xf32, #tpu.memory_space<vmem>>, %arg5: memref<1x16x128xf32, #tpu.memory_space<vmem>>, %arg6: memref<18x128xf32, #tpu.memory_space<vmem>>) attributes {dimension_semantics = [#tpu.dimension_semantics<parallel>], iteration_bounds = array<i64: 1>, scalar_prefetch = 0 : i64, scratch_operands = 1 : i64, tpu.core_type = #tpu.core_type<tc>, window_params = [{transform_indices = @transform_0, window_bounds = array<i64: 1, 16, 128>}, {pipeline_mode = #tpu.pipeline_mode<synchronous>, transform_indices = @transform_1, window_bounds = array<i64: 6, 128, 128>}, {pipeline_mode = #tpu.pipeline_mode<synchronous>, transform_indices = @transform_2, window_bounds = array<i64: 128, 128>}, {pipeline_mode = #tpu.pipeline_mode<synchronous>, transform_indices = @transform_3, window_bounds = array<i64: 4, 128>}, {transform_indices = @transform_4, window_bounds = array<i64: 1, 16, 128>}]} {
    %cst = arith.constant 0.000000e+00 : f32
    %0 = vector.broadcast %cst : f32 to vector<1x128xf32>
    %c0 = arith.constant 0 : index
    %c0_0 = arith.constant 0 : index
    %1 = vector.load %arg4[%c0, %c0_0] : memref<4x128xf32, #tpu.memory_space<vmem>>, vector<1x128xf32>
    %c1 = arith.constant 1 : index
    %c0_1 = arith.constant 0 : index
    %2 = vector.load %arg4[%c1, %c0_1] : memref<4x128xf32, #tpu.memory_space<vmem>>, vector<1x128xf32>
    %c2 = arith.constant 2 : index
    %c0_2 = arith.constant 0 : index
    %3 = vector.load %arg4[%c2, %c0_2] : memref<4x128xf32, #tpu.memory_space<vmem>>, vector<1x128xf32>
    %c3 = arith.constant 3 : index
    %c0_3 = arith.constant 0 : index
    %4 = vector.load %arg4[%c3, %c0_3] : memref<4x128xf32, #tpu.memory_space<vmem>>, vector<1x128xf32>
    %c0_4 = arith.constant 0 : index
    %c0_5 = arith.constant 0 : index
    %5 = vector.load %arg6[%c0_4, %c0_5] : memref<18x128xf32, #tpu.memory_space<vmem>>, vector<1x128xf32>
    tpu.vector_store %arg6[%c0_4, %c0_5], %0 {strides = array<i32>} : memref<18x128xf32, #tpu.memory_space<vmem>>, vector<1x128xf32>,
    %c17 = arith.constant 17 : index
    %c0_6 = arith.constant 0 : index
    %6 = vector.load %arg6[%c17, %c0_6] : memref<18x128xf32, #tpu.memory_space<vmem>>, vector<1x128xf32>
    tpu.vector_store %arg6[%c17, %c0_6], %0 {strides = array<i32>} : memref<18x128xf32, #tpu.memory_space<vmem>>, vector<1x128xf32>,
    %c0_7 = arith.constant 0 : index
    %c0_8 = arith.constant 0 : index
    %c0_9 = arith.constant 0 : index
    %7 = vector.load %arg1[%c0_7, %c0_8, %c0_9] : memref<1x16x128xf32, #tpu.memory_space<vmem>>, vector<1x16x128xf32>
    %8 = vector.shape_cast %7 : vector<1x16x128xf32> to vector<16x128xf32>
    %c1_10 = arith.constant 1 : index
    %c0_11 = arith.constant 0 : index
    %9 = vector.load %arg6[%c1_10, %c0_11] : memref<18x128xf32, #tpu.memory_space<vmem>>, vector<16x128xf32>
    tpu.vector_store %arg6[%c1_10, %c0_11], %8 {strides = array<i32>} : memref<18x128xf32, #tpu.memory_space<vmem>>, vector<16x128xf32>,
    %c0_12 = arith.constant 0 : index
    %c0_13 = arith.constant 0 : index
    %10 = vector.load %arg6[%c0_12, %c0_13] : memref<18x128xf32, #tpu.memory_space<vmem>>, vector<18x128xf32>
    %11 = arith.truncf %10 : vector<18x128xf32> to vector<18x128xbf16>
    %12 = vector.extract_strided_slice %11 {offsets = [0, 0], sizes = [16, 128], strides = [1, 1]} : vector<18x128xbf16> to vector<16x128xbf16>
    %c0_14 = arith.constant 0 : index
    %c0_15 = arith.constant 0 : index
    %c0_16 = arith.constant 0 : index
    %13 = vector.load %arg2[%c0_14, %c0_15, %c0_16] : memref<6x128x128xbf16, #tpu.memory_space<vmem>>, vector<1x128x128xbf16>
    %14 = vector.shape_cast %13 : vector<1x128x128xbf16> to vector<128x128xbf16>
    %cst_17 = arith.constant dense<0.000000e+00> : vector<16x128xf32>
    %15 = tpu.matmul %12, %14, %cst_17 {dimension_numbers = #tpu.dot_dimension_numbers<[1], [0], [0], [1], [0, 0, 1, 1], [], []>} : vector<16x128xbf16>, vector<128x128xbf16>, vector<16x128xf32> -> vector<16x128xf32>
    %16 = vector.extract_strided_slice %11 {offsets = [1, 0], sizes = [16, 128], strides = [1, 1]} : vector<18x128xbf16> to vector<16x128xbf16>
    %c1_18 = arith.constant 1 : index
    %c0_19 = arith.constant 0 : index
    %c0_20 = arith.constant 0 : index
    %17 = vector.load %arg2[%c1_18, %c0_19, %c0_20] : memref<6x128x128xbf16, #tpu.memory_space<vmem>>, vector<1x128x128xbf16>
    %18 = vector.shape_cast %17 : vector<1x128x128xbf16> to vector<128x128xbf16>
    %cst_21 = arith.constant dense<0.000000e+00> : vector<16x128xf32>
    %19 = tpu.matmul %16, %18, %cst_21 {dimension_numbers = #tpu.dot_dimension_numbers<[1], [0], [0], [1], [0, 0, 1, 1], [], []>} : vector<16x128xbf16>, vector<128x128xbf16>, vector<16x128xf32> -> vector<16x128xf32>
    %20 = arith.addf %15, %19 : vector<16x128xf32>
    %21 = vector.extract_strided_slice %11 {offsets = [2, 0], sizes = [16, 128], strides = [1, 1]} : vector<18x128xbf16> to vector<16x128xbf16>
    %c2_22 = arith.constant 2 : index
    %c0_23 = arith.constant 0 : index
    %c0_24 = arith.constant 0 : index
    %22 = vector.load %arg2[%c2_22, %c0_23, %c0_24] : memref<6x128x128xbf16, #tpu.memory_space<vmem>>, vector<1x128x128xbf16>
    %23 = vector.shape_cast %22 : vector<1x128x128xbf16> to vector<128x128xbf16>
    %cst_25 = arith.constant dense<0.000000e+00> : vector<16x128xf32>
    %24 = tpu.matmul %21, %23, %cst_25 {dimension_numbers = #tpu.dot_dimension_numbers<[1], [0], [0], [1], [0, 0, 1, 1], [], []>} : vector<16x128xbf16>, vector<128x128xbf16>, vector<16x128xf32> -> vector<16x128xf32>
    %25 = arith.addf %20, %24 : vector<16x128xf32>
    %cst_26 = arith.constant dense<0.000000e+00> : vector<128xf32>
    %26 = vector.multi_reduction <add>, %25, %cst_26 [0] : vector<16x128xf32> to vector<128xf32>
    %27 = vector.shape_cast %26 : vector<128xf32> to vector<1x128xf32>
    %28 = arith.mulf %25, %25 : vector<16x128xf32>
    %cst_27 = arith.constant dense<0.000000e+00> : vector<128xf32>
    %29 = vector.multi_reduction <add>, %28, %cst_27 [0] : vector<16x128xf32> to vector<128xf32>
    %30 = vector.shape_cast %29 : vector<128xf32> to vector<1x128xf32>
    %31 = tpu.concatenate %27, %30 in 0 : vector<1x128xf32>, vector<1x128xf32> -> vector<2x128xf32>
    %c0_28 = arith.constant 0 : index
    %c0_29 = arith.constant 0 : index
    %32 = vector.load %arg3[%c0_28, %c0_29] : memref<128x128xf32, #tpu.memory_space<vmem>>, vector<128x128xf32>
    %cst_30 = arith.constant dense<0.000000e+00> : vector<2x128xf32>
    %33 = tpu.matmul %31, %32, %cst_30 {dimension_numbers = #tpu.dot_dimension_numbers<[1], [0], [0], [1], [0, 0, 1, 1], [], []>} : vector<2x128xf32>, vector<128x128xf32>, vector<2x128xf32> -> vector<2x128xf32>
    %cst_31 = arith.constant 3.906250e-03 : f32
    %34 = vector.broadcast %cst_31 : f32 to vector<2x128xf32>
    %35 = arith.mulf %33, %34 : vector<2x128xf32>
    %36 = vector.extract_strided_slice %35 {offsets = [0, 0], sizes = [1, 128], strides = [1, 1]} : vector<2x128xf32> to vector<1x128xf32>
    %37 = vector.extract_strided_slice %35 {offsets = [1, 0], sizes = [1, 128], strides = [1, 1]} : vector<2x128xf32> to vector<1x128xf32>
    %38 = arith.mulf %36, %36 : vector<1x128xf32>
    %39 = arith.subf %37, %38 : vector<1x128xf32>
    %cst_32 = arith.constant 0.000000e+00 : f32
    %40 = vector.broadcast %cst_32 : f32 to vector<1x128xf32>
    %41 = arith.maximumf %39, %40 : vector<1x128xf32>
    %cst_33 = arith.constant 9.99999974E-6 : f32
    %42 = vector.broadcast %cst_33 : f32 to vector<1x128xf32>
    %43 = arith.addf %41, %42 : vector<1x128xf32>
    %44 = math.rsqrt %43 : vector<1x128xf32>
    %45 = arith.mulf %1, %44 : vector<1x128xf32>
    %46 = arith.mulf %36, %45 : vector<1x128xf32>
    %47 = arith.subf %2, %46 : vector<1x128xf32>
    %48 = vector.broadcast %45 : vector<1x128xf32> to vector<16x128xf32>
    %49 = arith.mulf %25, %48 : vector<16x128xf32>
    %50 = vector.broadcast %47 : vector<1x128xf32> to vector<16x128xf32>
    %51 = arith.addf %49, %50 : vector<16x128xf32>
    %cst_34 = arith.constant 0.000000e+00 : f32
    %52 = vector.broadcast %cst_34 : f32 to vector<16x128xf32>
    %53 = arith.maximumf %51, %52 : vector<16x128xf32>
    %c1_35 = arith.constant 1 : index
    %c0_36 = arith.constant 0 : index
    %54 = vector.load %arg6[%c1_35, %c0_36] : memref<18x128xf32, #tpu.memory_space<vmem>>, vector<16x128xf32>
    tpu.vector_store %arg6[%c1_35, %c0_36], %53 {strides = array<i32>} : memref<18x128xf32, #tpu.memory_space<vmem>>, vector<16x128xf32>,
    %c0_37 = arith.constant 0 : index
    %c0_38 = arith.constant 0 : index
    %55 = vector.load %arg6[%c0_37, %c0_38] : memref<18x128xf32, #tpu.memory_space<vmem>>, vector<18x128xf32>
    %56 = arith.truncf %55 : vector<18x128xf32> to vector<18x128xbf16>
    %57 = vector.extract_strided_slice %56 {offsets = [0, 0], sizes = [16, 128], strides = [1, 1]} : vector<18x128xbf16> to vector<16x128xbf16>
    %c3_39 = arith.constant 3 : index
    %c0_40 = arith.constant 0 : index
    %c0_41 = arith.constant 0 : index
    %58 = vector.load %arg2[%c3_39, %c0_40, %c0_41] : memref<6x128x128xbf16, #tpu.memory_space<vmem>>, vector<1x128x128xbf16>
    %59 = vector.shape_cast %58 : vector<1x128x128xbf16> to vector<128x128xbf16>
    %cst_42 = arith.constant dense<0.000000e+00> : vector<16x128xf32>
    %60 = tpu.matmul %57, %59, %cst_42 {dimension_numbers = #tpu.dot_dimension_numbers<[1], [0], [0], [1], [0, 0, 1, 1], [], []>} : vector<16x128xbf16>, vector<128x128xbf16>, vector<16x128xf32> -> vector<16x128xf32>
    %61 = vector.extract_strided_slice %56 {offsets = [1, 0], sizes = [16, 128], strides = [1, 1]} : vector<18x128xbf16> to vector<16x128xbf16>
    %c4 = arith.constant 4 : index
    %c0_43 = arith.constant 0 : index
    %c0_44 = arith.constant 0 : index
    %62 = vector.load %arg2[%c4, %c0_43, %c0_44] : memref<6x128x128xbf16, #tpu.memory_space<vmem>>, vector<1x128x128xbf16>
    %63 = vector.shape_cast %62 : vector<1x128x128xbf16> to vector<128x128xbf16>
    %cst_45 = arith.constant dense<0.000000e+00> : vector<16x128xf32>
    %64 = tpu.matmul %61, %63, %cst_45 {dimension_numbers = #tpu.dot_dimension_numbers<[1], [0], [0], [1], [0, 0, 1, 1], [], []>} : vector<16x128xbf16>, vector<128x128xbf16>, vector<16x128xf32> -> vector<16x128xf32>
    %65 = arith.addf %60, %64 : vector<16x128xf32>
    %66 = vector.extract_strided_slice %56 {offsets = [2, 0], sizes = [16, 128], strides = [1, 1]} : vector<18x128xbf16> to vector<16x128xbf16>
    %c5 = arith.constant 5 : index
    %c0_46 = arith.constant 0 : index
    %c0_47 = arith.constant 0 : index
    %67 = vector.load %arg2[%c5, %c0_46, %c0_47] : memref<6x128x128xbf16, #tpu.memory_space<vmem>>, vector<1x128x128xbf16>
    %68 = vector.shape_cast %67 : vector<1x128x128xbf16> to vector<128x128xbf16>
    %cst_48 = arith.constant dense<0.000000e+00> : vector<16x128xf32>
    %69 = tpu.matmul %66, %68, %cst_48 {dimension_numbers = #tpu.dot_dimension_numbers<[1], [0], [0], [1], [0, 0, 1, 1], [], []>} : vector<16x128xbf16>, vector<128x128xbf16>, vector<16x128xf32> -> vector<16x128xf32>
    %70 = arith.addf %65, %69 : vector<16x128xf32>
    %cst_49 = arith.constant dense<0.000000e+00> : vector<128xf32>
    %71 = vector.multi_reduction <add>, %70, %cst_49 [0] : vector<16x128xf32> to vector<128xf32>
    %72 = vector.shape_cast %71 : vector<128xf32> to vector<1x128xf32>
    %73 = arith.mulf %70, %70 : vector<16x128xf32>
    %cst_50 = arith.constant dense<0.000000e+00> : vector<128xf32>
    %74 = vector.multi_reduction <add>, %73, %cst_50 [0] : vector<16x128xf32> to vector<128xf32>
    %75 = vector.shape_cast %74 : vector<128xf32> to vector<1x128xf32>
    %76 = tpu.concatenate %72, %75 in 0 : vector<1x128xf32>, vector<1x128xf32> -> vector<2x128xf32>
    %c0_51 = arith.constant 0 : index
    %c0_52 = arith.constant 0 : index
    %77 = vector.load %arg3[%c0_51, %c0_52] : memref<128x128xf32, #tpu.memory_space<vmem>>, vector<128x128xf32>
    %cst_53 = arith.constant dense<0.000000e+00> : vector<2x128xf32>
    %78 = tpu.matmul %76, %77, %cst_53 {dimension_numbers = #tpu.dot_dimension_numbers<[1], [0], [0], [1], [0, 0, 1, 1], [], []>} : vector<2x128xf32>, vector<128x128xf32>, vector<2x128xf32> -> vector<2x128xf32>
    %cst_54 = arith.constant 3.906250e-03 : f32
    %79 = vector.broadcast %cst_54 : f32 to vector<2x128xf32>
    %80 = arith.mulf %78, %79 : vector<2x128xf32>
    %81 = vector.extract_strided_slice %80 {offsets = [0, 0], sizes = [1, 128], strides = [1, 1]} : vector<2x128xf32> to vector<1x128xf32>
    %82 = vector.extract_strided_slice %80 {offsets = [1, 0], sizes = [1, 128], strides = [1, 1]} : vector<2x128xf32> to vector<1x128xf32>
    %83 = arith.mulf %81, %81 : vector<1x128xf32>
    %84 = arith.subf %82, %83 : vector<1x128xf32>
    %cst_55 = arith.constant 0.000000e+00 : f32
    %85 = vector.broadcast %cst_55 : f32 to vector<1x128xf32>
    %86 = arith.maximumf %84, %85 : vector<1x128xf32>
    %cst_56 = arith.constant 9.99999974E-6 : f32
    %87 = vector.broadcast %cst_56 : f32 to vector<1x128xf32>
    %88 = arith.addf %86, %87 : vector<1x128xf32>
    %89 = math.rsqrt %88 : vector<1x128xf32>
    %90 = arith.mulf %3, %89 : vector<1x128xf32>
    %91 = arith.mulf %81, %90 : vector<1x128xf32>
    %92 = arith.subf %4, %91 : vector<1x128xf32>
    %93 = vector.broadcast %90 : vector<1x128xf32> to vector<16x128xf32>
    %94 = arith.mulf %70, %93 : vector<16x128xf32>
    %95 = vector.broadcast %92 : vector<1x128xf32> to vector<16x128xf32>
    %96 = arith.addf %94, %95 : vector<16x128xf32>
    %c0_57 = arith.constant 0 : index
    %c0_58 = arith.constant 0 : index
    %c0_59 = arith.constant 0 : index
    %97 = vector.load %arg1[%c0_57, %c0_58, %c0_59] : memref<1x16x128xf32, #tpu.memory_space<vmem>>, vector<1x16x128xf32>
    %98 = vector.shape_cast %97 : vector<1x16x128xf32> to vector<16x128xf32>
    %99 = arith.addf %98, %96 : vector<16x128xf32>
    %c0_60 = arith.constant 0 : index
    %c0_61 = arith.constant 0 : index
    %c0_62 = arith.constant 0 : index
    %100 = vector.load %arg5[%c0_60, %c0_61, %c0_62] : memref<1x16x128xf32, #tpu.memory_space<vmem>>, vector<1x16x128xf32>
    %101 = vector.shape_cast %100 : vector<1x16x128xf32> to vector<16x128xf32>
    %102 = vector.shape_cast %99 : vector<16x128xf32> to vector<1x16x128xf32>
    tpu.vector_store %arg5[%c0_60, %c0_61, %c0_62], %102 {strides = array<i32>} : memref<1x16x128xf32, #tpu.memory_space<vmem>>, vector<1x16x128xf32>,
    return
  }
  func.func @transform_0(%arg0: i32) -> (i32, i32, i32) {
    %c0_i32 = arith.constant 0 : i32
    %c0_i32_0 = arith.constant 0 : i32
    %c0_i32_1 = arith.constant 0 : i32
    return %arg0, %c0_i32, %c0_i32_0 : i32, i32, i32
  }
  func.func @transform_1(%arg0: i32) -> (i32, i32, i32) {
    %c0_i32 = arith.constant 0 : i32
    %c0_i32_0 = arith.constant 0 : i32
    %c0_i32_1 = arith.constant 0 : i32
    %c0_i32_2 = arith.constant 0 : i32
    return %c0_i32, %c0_i32_0, %c0_i32_1 : i32, i32, i32
  }
  func.func @transform_2(%arg0: i32) -> (i32, i32) {
    %c0_i32 = arith.constant 0 : i32
    %c0_i32_0 = arith.constant 0 : i32
    %c0_i32_1 = arith.constant 0 : i32
    return %c0_i32, %c0_i32_0 : i32, i32
  }
  func.func @transform_3(%arg0: i32) -> (i32, i32) {
    %c0_i32 = arith.constant 0 : i32
    %c0_i32_0 = arith.constant 0 : i32
    %c0_i32_1 = arith.constant 0 : i32
    return %c0_i32, %c0_i32_0 : i32, i32
  }
  func.func @transform_4(%arg0: i32) -> (i32, i32, i32) {
    %c0_i32 = arith.constant 0 : i32
    %c0_i32_0 = arith.constant 0 : i32
    %c0_i32_1 = arith.constant 0 : i32
    return %arg0, %c0_i32, %c0_i32_0 : i32, i32, i32
  }
}

</mosaic_0001>

<llo_original>
// kernel: tpu_custom_call.1
$region0: #{tpu_custom_call.1}
  #allocation0 [shape = 'u32[]', space=smem, size = 0x4, offset = 0x4, fixed_abs, tag = 'smem constant byte address 0x4 - core index']
  #allocation1 [shape = 'u32[144,128]{1,0:T(1,128)}', space=vmem, size = 0x12000, scoped, tag = 'internal scratch']
  #allocation2 [shape = 'f32[18,128]{1,0:T(8,128)}', space=vmem, size = 0x3000, scoped, tag = 'scratch operand']
  %s0 = inlined_call_operand.hbm [shape: f32[1,16,128], index: 0, kind: input, shape index: {}]
  %s1 = inlined_call_operand.hbm [shape: bf16[6,128,128], index: 1, kind: input, shape index: {}]
  %s2 = inlined_call_operand.hbm [shape: f32[128,128], index: 2, kind: input, shape index: {}]
  %s3 = inlined_call_operand.vmem [shape: f32[4,128], index: 3, kind: input, shape index: {}]
  %s4 = inlined_call_operand.hbm [shape: f32[1,16,128], index: 4, kind: output, shape index: {}]
  %s5 = sld [smem:[#allocation0]]
  $region38: #{tpu_custom_call.1} parent=0
    _
  %s7 = ssub.s32 1, %s5
  %s8 = scalar_select 0, %s7, %s5
  $region1: #{tpu_custom_call.1} parent=0
    #allocation3 [shape = 'u8[8192]{0}', space=vmem, size = 0x2000, scoped, tag = 'input window, operand 0, single buffered']
    #allocation4 [shape = 's32[1]{0}', space=sflag, size = 0x4, scoped, tag = 'scoped memory for tpu_custom_call.1']
    #allocation5 [shape = 's32[1]{0}', space=sflag, size = 0x4, scoped, tag = 'scoped memory for tpu_custom_call.1']
    #allocation6 [shape = 'u8[196608]{0}', space=vmem, size = 0x30000, scoped, tag = 'input window, operand 1, single buffered']
    #allocation7 [shape = 's32[1]{0}', space=sflag, size = 0x4, scoped, tag = 'scoped memory for tpu_custom_call.1']
    #allocation8 [shape = 'u8[65536]{0}', space=vmem, size = 0x10000, scoped, tag = 'input window, operand 2, single buffered']
    #allocation9 [shape = 'u8[8192]{0}', space=vmem, size = 0x2000, scoped, tag = 'output window, operand 0, single buffered']
    %9 = vsyncpa [#allocation4], 0
    %10 = vsyncpa [#allocation7], 0
    %11 = vsyncpa [#allocation5], 0
    // Predicated region
    $region2: #{tpu_custom_call.1} parent=1 // pred_check
      _
    $region3: #{tpu_custom_call.1} parent=1 // pred_check_branch
      %13 = sbr.rel (0) target = $region5
    $region4: #{tpu_custom_call.1} parent=1 // pred_region
      %s15 = ssub.s32 256, 256
      %16 = vsyncadd [#allocation4], %s15
      %s17 = sshll.u32 [#allocation3], 4
      %s18 = int_to_ptr.vmem [resolvable:$true] %s17
      %23 = dma.hbm_to_vmem [thread:$0]  %s0, 256, %s18, [#allocation4], 128, 128, 8
    $region5: #{tpu_custom_call.1} parent=1 // pred_fallthru
      _
    // Predicated region
    $region6: #{tpu_custom_call.1} parent=1 // pred_check
      _
    $region7: #{tpu_custom_call.1} parent=1 // pred_check_branch
      %25 = sbr.rel (0) target = $region9
    $region8: #{tpu_custom_call.1} parent=1 // pred_region
      %s27 = ssub.s32 6144, 6144
      %28 = vsyncadd [#allocation7], %s27
      %s29 = sshll.u32 [#allocation6], 4
      %s30 = int_to_ptr.vmem [resolvable:$true] %s29
      %35 = dma.hbm_to_vmem [thread:$0]  %s1, 6144, %s30, [#allocation7], 64, 64, 4
    $region9: #{tpu_custom_call.1} parent=1 // pred_fallthru
      _
    // Predicated region
    $region10: #{tpu_custom_call.1} parent=1 // pred_check
      _
    $region11: #{tpu_custom_call.1} parent=1 // pred_check_branch
      %37 = sbr.rel (0) target = $region13
    $region12: #{tpu_custom_call.1} parent=1 // pred_region
      %s39 = ssub.s32 2048, 2048
      %40 = vsyncadd [#allocation7], %s39
      %s41 = sshll.u32 [#allocation8], 4
      %s42 = int_to_ptr.vmem [resolvable:$true] %s41
      %47 = dma.hbm_to_vmem [thread:$0]  %s2, 2048, %s42, [#allocation7], 128, 128, 8
    $region13: #{tpu_custom_call.1} parent=1 // pred_fallthru
      _
    // Predicated region
    $region14: #{tpu_custom_call.1} parent=1 // pred_check
      _
    $region15: #{tpu_custom_call.1} parent=1 // pred_check_branch
      %49 = sbr.rel (0) target = $region17
    $region16: #{tpu_custom_call.1} parent=1 // pred_region
      _
    $region17: #{tpu_custom_call.1} parent=1 // pred_fallthru
      _
    // Predicated region
    $region18: #{tpu_custom_call.1} parent=1 // pred_check
      _
    $region19: #{tpu_custom_call.1} parent=1 // pred_check_branch
      %51 = sbr.rel (0) target = $region21
    $region20: #{tpu_custom_call.1} parent=1 // pred_region
      %52 = dma.done [#allocation4], 256
    $region21: #{tpu_custom_call.1} parent=1 // pred_fallthru
      _
    // Predicated region
    $region22: #{tpu_custom_call.1} parent=1 // pred_check
      _
    $region23: #{tpu_custom_call.1} parent=1 // pred_check_branch
      %54 = sbr.rel (0) target = $region25
    $region24: #{tpu_custom_call.1} parent=1 // pred_region
      %55 = dma.done [#allocation7], 6144
    $region25: #{tpu_custom_call.1} parent=1 // pred_fallthru
      _
    // Predicated region
    $region26: #{tpu_custom_call.1} parent=1 // pred_check
      _
    $region27: #{tpu_custom_call.1} parent=1 // pred_check_branch
      %57 = sbr.rel (0) target = $region29
    $region28: #{tpu_custom_call.1} parent=1 // pred_region
      %58 = dma.done [#allocation7], 2048
    $region29: #{tpu_custom_call.1} parent=1 // pred_fallthru
      _
    %v60 = vld [vmem:[%s3] sm:$0x1]
    %v61 = vld [vmem:[%s3 + $0x1] sm:$0x1]
    %v62 = vld [vmem:[%s3 + $0x2] sm:$0x1]
    %v63 = vld [vmem:[%s3 + $0x3] sm:$0x1]
    %64 = vst [vmem:[#allocation2] sm:$0x1] 0.0
    %65 = vst [vmem:[#allocation2 + $0x11] sm:$0x1] 0.0
    %v66 = vld [vmem:[#allocation3] sm:$0xff]
    %v67 = vld [vmem:[#allocation3 + $0x8] sm:$0xff]
    %68 = vst [vmem:[#allocation2 + $0x1] sm:$0xff] %v66
    %69 = vst [vmem:[#allocation2 + $0x9] sm:$0xff] %v67
    %v70 = vld [vmem:[#allocation2] sm:$0xff]
    %v71 = vld [vmem:[#allocation2 + $0x8] sm:$0xff]
    %v72 = vld [vmem:[#allocation2 + $0x10] sm:$0x3]
    %v73 = vpack.c.bf16 %v71, %v70
    %v74 = vpack.c.bf16 %v72, %v72
    %v75 = vld [vmem:[#allocation6] sm:$0xf]
    %v76 = vld [vmem:[#allocation6 + $0x4] sm:$0xf]
    %v77 = vld [vmem:[#allocation6 + $0x8] sm:$0xf]
    %v78 = vld [vmem:[#allocation6 + $0xc] sm:$0xf]
    %v79 = vld [vmem:[#allocation6 + $0x10] sm:$0xf]
    %v80 = vld [vmem:[#allocation6 + $0x14] sm:$0xf]
    %v81 = vld [vmem:[#allocation6 + $0x18] sm:$0xf]
    %v82 = vld [vmem:[#allocation6 + $0x1c] sm:$0xf]
    %v83 = vld [vmem:[#allocation6 + $0x20] sm:$0xf]
    %v84 = vld [vmem:[#allocation6 + $0x24] sm:$0xf]
    %v85 = vld [vmem:[#allocation6 + $0x28] sm:$0xf]
    %v86 = vld [vmem:[#allocation6 + $0x2c] sm:$0xf]
    %v87 = vld [vmem:[#allocation6 + $0x30] sm:$0xf]
    %v88 = vld [vmem:[#allocation6 + $0x34] sm:$0xf]
    %v89 = vld [vmem:[#allocation6 + $0x38] sm:$0xf]
    %v90 = vld [vmem:[#allocation6 + $0x3c] sm:$0xf]
    %s91 = scalar_lea.vmem [#allocation6], 64
    %v92 = vld [vmem:[%s91] sm:$0xf]
    %v93 = vld [vmem:[%s91 + $0x4] sm:$0xf]
    %v94 = vld [vmem:[%s91 + $0x8] sm:$0xf]
    %v95 = vld [vmem:[%s91 + $0xc] sm:$0xf]
    %v96 = vld [vmem:[%s91 + $0x10] sm:$0xf]
    %v97 = vld [vmem:[%s91 + $0x14] sm:$0xf]
    %v98 = vld [vmem:[%s91 + $0x18] sm:$0xf]
    %v99 = vld [vmem:[%s91 + $0x1c] sm:$0xf]
    %v100 = vld [vmem:[%s91 + $0x20] sm:$0xf]
    %v101 = vld [vmem:[%s91 + $0x24] sm:$0xf]
    %v102 = vld [vmem:[%s91 + $0x28] sm:$0xf]
    %v103 = vld [vmem:[%s91 + $0x2c] sm:$0xf]
    %v104 = vld [vmem:[%s91 + $0x30] sm:$0xf]
    %v105 = vld [vmem:[%s91 + $0x34] sm:$0xf]
    %v106 = vld [vmem:[%s91 + $0x38] sm:$0xf]
    %v107 = vld [vmem:[%s91 + $0x3c] sm:$0xf]
    %vm108 = vsmask.f32 7424
    %v110 = vshrl.u32 %v73, 16
    %v112 = vshll.u32 %v73, 16
    %v114 = vrot.slane %v112, 1
    %v115 = vor.u32 %v110, %v114
    %v117 = vshll.u32 %v74, 16
    %v119 = vrot.slane %v117, 1
    %v120 = vsel %vm108, %v115, %v119
    %v138 = vunpack.c.l.b16 %v92
    %v139 = vunpack.c.l.b16 %v93
    %v140 = vunpack.c.l.b16 %v94
    %v141 = vunpack.c.l.b16 %v95
    %v142 = vunpack.c.l.b16 %v96
    %v143 = vunpack.c.l.b16 %v97
    %v144 = vunpack.c.l.b16 %v98
    %v145 = vunpack.c.l.b16 %v99
    %v146 = vunpack.c.l.b16 %v100
    %v147 = vunpack.c.l.b16 %v101
    %v148 = vunpack.c.l.b16 %v102
    %v149 = vunpack.c.l.b16 %v103
    %v150 = vunpack.c.l.b16 %v104
    %v151 = vunpack.c.l.b16 %v105
    %v152 = vunpack.c.l.b16 %v106
    %v153 = vunpack.c.l.b16 %v107
    %v154 = vpack.c.b16 %v139, %v138
    %v155 = vpack.c.b16 %v141, %v140
    %v156 = vpack.c.b16 %v143, %v142
    %v157 = vpack.c.b16 %v145, %v144
    %v158 = vpack.c.b16 %v147, %v146
    %v159 = vpack.c.b16 %v149, %v148
    %v160 = vpack.c.b16 %v151, %v150
    %v161 = vpack.c.b16 %v153, %v152
    %170 = vmatprep.subr.bf16.mxu0 0
    %171 = vmatpush1.bf16.msra.mxu0 %v154
    %172 = vmatprep.subr.bf16.mxu0 0
    %173 = vmatpush1.bf16.msra.mxu0 %v155
    %174 = vmatprep.subr.bf16.mxu0 0
    %175 = vmatpush1.bf16.msra.mxu0 %v156
    %176 = vmatprep.subr.bf16.mxu0 0
    %177 = vmatpush1.bf16.msra.mxu0 %v157
    %178 = vmatprep.subr.bf16.mxu0 0
    %179 = vmatpush1.bf16.msra.mxu0 %v158
    %180 = vmatprep.subr.bf16.mxu0 0
    %181 = vmatpush1.bf16.msra.mxu0 %v159
    %182 = vmatprep.subr.bf16.mxu0 0
    %183 = vmatpush1.bf16.msra.mxu0 %v160
    %184 = vmatprep.subr.bf16.mxu0 0
    %185 = vmatpush1.bf16.msra.mxu0 %v161
    %186 = vmatprep.subr.bf16.mxu0 0
    %187 = vmatpush1.bf16.msra.mxu0 0
    %188 = vmatprep.subr.bf16.mxu0 0
    %189 = vmatpush1.bf16.msra.mxu0 0
    %190 = vmatprep.subr.bf16.mxu0 0
    %191 = vmatpush1.bf16.msra.mxu0 0
    %192 = vmatprep.subr.bf16.mxu0 0
    %193 = vmatpush1.bf16.msra.mxu0 0
    %194 = vmatprep.subr.bf16.mxu0 0
    %195 = vmatpush1.bf16.msra.mxu0 0
    %196 = vmatprep.subr.bf16.mxu0 0
    %197 = vmatpush1.bf16.msra.mxu0 0
    %198 = vmatprep.subr.bf16.mxu0 0
    %199 = vmatpush1.bf16.msra.mxu0 0
    %200 = vmatprep.subr.bf16.mxu0 0
    %201 = vmatpush1.bf16.msra.mxu0 0
    %202 = vmatprep.mubr.bf16.mxu0 0
    %203 = vmatmul.mubr.bf16.gmra.mrb[0].mxu0 %v120
    %v204 = vpop.f32.mrb[0].mxu0
    %v205 = vadd.f32 0.0, %v204
    %v206 = vpop.f32.mrb[0].mxu0
    %v207 = vpop.f32.mrb[0].mxu0
    %v208 = vadd.f32 0.0, %v207
    %v209 = vpop.f32.mrb[0].mxu0
    %210 = vdwg.mxu0
    %v227 = vunpack.c.l.b16 %v75
    %v228 = vunpack.c.l.b16 %v76
    %v229 = vunpack.c.l.b16 %v77
    %v230 = vunpack.c.l.b16 %v78
    %v231 = vunpack.c.l.b16 %v79
    %v232 = vunpack.c.l.b16 %v80
    %v233 = vunpack.c.l.b16 %v81
    %v234 = vunpack.c.l.b16 %v82
    %v235 = vunpack.c.l.b16 %v83
    %v236 = vunpack.c.l.b16 %v84
    %v237 = vunpack.c.l.b16 %v85
    %v238 = vunpack.c.l.b16 %v86
    %v239 = vunpack.c.l.b16 %v87
    %v240 = vunpack.c.l.b16 %v88
    %v241 = vunpack.c.l.b16 %v89
    %v242 = vunpack.c.l.b16 %v90
    %v243 = vpack.c.b16 %v228, %v227
    %v244 = vpack.c.b16 %v230, %v229
    %v245 = vpack.c.b16 %v232, %v231
    %v246 = vpack.c.b16 %v234, %v233
    %v247 = vpack.c.b16 %v236, %v235
    %v248 = vpack.c.b16 %v238, %v237
    %v249 = vpack.c.b16 %v240, %v239
    %v250 = vpack.c.b16 %v242, %v241
    %259 = vmatprep.subr.bf16.mxu0 0
    %260 = vmatpush1.bf16.msra.mxu0 %v243
    %261 = vmatprep.subr.bf16.mxu0 0
    %262 = vmatpush1.bf16.msra.mxu0 %v244
    %263 = vmatprep.subr.bf16.mxu0 0
    %264 = vmatpush1.bf16.msra.mxu0 %v245
    %265 = vmatprep.subr.bf16.mxu0 0
    %266 = vmatpush1.bf16.msra.mxu0 %v246
    %267 = vmatprep.subr.bf16.mxu0 0
    %268 = vmatpush1.bf16.msra.mxu0 %v247
    %269 = vmatprep.subr.bf16.mxu0 0
    %270 = vmatpush1.bf16.msra.mxu0 %v248
    %271 = vmatprep.subr.bf16.mxu0 0
    %272 = vmatpush1.bf16.msra.mxu0 %v249
    %273 = vmatprep.subr.bf16.mxu0 0
    %274 = vmatpush1.bf16.msra.mxu0 %v250
    %275 = vmatprep.subr.bf16.mxu0 0
    %276 = vmatpush1.bf16.msra.mxu0 0
    %277 = vmatprep.subr.bf16.mxu0 0
    %278 = vmatpush1.bf16.msra.mxu0 0
    %279 = vmatprep.subr.bf16.mxu0 0
    %280 = vmatpush1.bf16.msra.mxu0 0
    %281 = vmatprep.subr.bf16.mxu0 0
    %282 = vmatpush1.bf16.msra.mxu0 0
    %283 = vmatprep.subr.bf16.mxu0 0
    %284 = vmatpush1.bf16.msra.mxu0 0
    %285 = vmatprep.subr.bf16.mxu0 0
    %286 = vmatpush1.bf16.msra.mxu0 0
    %287 = vmatprep.subr.bf16.mxu0 0
    %288 = vmatpush1.bf16.msra.mxu0 0
    %289 = vmatprep.subr.bf16.mxu0 0
    %290 = vmatpush1.bf16.msra.mxu0 0
    %291 = vmatprep.mubr.bf16.mxu0 0
    %292 = vmatmul.mubr.bf16.gmra.mrb[0].mxu0 %v73
    %v293 = vpop.f32.mrb[0].mxu0
    %v294 = vadd.f32 %v205, %v293
    %v295 = vpop.f32.mrb[0].mxu0
    %v296 = vpop.f32.mrb[0].mxu0
    %v297 = vadd.f32 %v208, %v296
    %v298 = vpop.f32.mrb[0].mxu0
    %299 = vdwg.mxu0
    %s300 = scalar_lea.vmem [#allocation6], 128
    %v301 = vld [vmem:[%s300] sm:$0xf]
    %v302 = vld [vmem:[%s300 + $0x4] sm:$0xf]
    %v303 = vld [vmem:[%s300 + $0x8] sm:$0xf]
    %v304 = vld [vmem:[%s300 + $0xc] sm:$0xf]
    %v305 = vld [vmem:[%s300 + $0x10] sm:$0xf]
    %v306 = vld [vmem:[%s300 + $0x14] sm:$0xf]
    %v307 = vld [vmem:[%s300 + $0x18] sm:$0xf]
    %v308 = vld [vmem:[%s300 + $0x1c] sm:$0xf]
    %v309 = vld [vmem:[%s300 + $0x20] sm:$0xf]
    %v310 = vld [vmem:[%s300 + $0x24] sm:$0xf]
    %v311 = vld [vmem:[%s300 + $0x28] sm:$0xf]
    %v312 = vld [vmem:[%s300 + $0x2c] sm:$0xf]
    %v313 = vld [vmem:[%s300 + $0x30] sm:$0xf]
    %v314 = vld [vmem:[%s300 + $0x34] sm:$0xf]
    %v315 = vld [vmem:[%s300 + $0x38] sm:$0xf]
    %v316 = vld [vmem:[%s300 + $0x3c] sm:$0xf]
    %vm319 = vcmask 1046528
    %v320 = vrot.slane %v73, 1
    %v321 = vrot.slane %v74, 1
    %v322 = vsel %vm319, %v320, %v321
    %v340 = vunpack.c.l.b16 %v301
    %v341 = vunpack.c.l.b16 %v302
    %v342 = vunpack.c.l.b16 %v303
    %v343 = vunpack.c.l.b16 %v304
    %v344 = vunpack.c.l.b16 %v305
    %v345 = vunpack.c.l.b16 %v306
    %v346 = vunpack.c.l.b16 %v307
    %v347 = vunpack.c.l.b16 %v308
    %v348 = vunpack.c.l.b16 %v309
    %v349 = vunpack.c.l.b16 %v310
    %v350 = vunpack.c.l.b16 %v311
    %v351 = vunpack.c.l.b16 %v312
    %v352 = vunpack.c.l.b16 %v313
    %v353 = vunpack.c.l.b16 %v314
    %v354 = vunpack.c.l.b16 %v315
    %v355 = vunpack.c.l.b16 %v316
    %v356 = vpack.c.b16 %v341, %v340
    %v357 = vpack.c.b16 %v343, %v342
    %v358 = vpack.c.b16 %v345, %v344
    %v359 = vpack.c.b16 %v347, %v346
    %v360 = vpack.c.b16 %v349, %v348
    %v361 = vpack.c.b16 %v351, %v350
    %v362 = vpack.c.b16 %v353, %v352
    %v363 = vpack.c.b16 %v355, %v354
    %372 = vmatprep.subr.bf16.mxu0 0
    %373 = vmatpush1.bf16.msra.mxu0 %v356
    %374 = vmatprep.subr.bf16.mxu0 0
    %375 = vmatpush1.bf16.msra.mxu0 %v357
    %376 = vmatprep.subr.bf16.mxu0 0
    %377 = vmatpush1.bf16.msra.mxu0 %v358
    %378 = vmatprep.subr.bf16.mxu0 0
    %379 = vmatpush1.bf16.msra.mxu0 %v359
    %380 = vmatprep.subr.bf16.mxu0 0
    %381 = vmatpush1.bf16.msra.mxu0 %v360
    %382 = vmatprep.subr.bf16.mxu0 0
    %383 = vmatpush1.bf16.msra.mxu0 %v361
    %384 = vmatprep.subr.bf16.mxu0 0
    %385 = vmatpush1.bf16.msra.mxu0 %v362
    %386 = vmatprep.subr.bf16.mxu0 0
    %387 = vmatpush1.bf16.msra.mxu0 %v363
    %388 = vmatprep.subr.bf16.mxu0 0
    %389 = vmatpush1.bf16.msra.mxu0 0
    %390 = vmatprep.subr.bf16.mxu0 0
    %391 = vmatpush1.bf16.msra.mxu0 0
    %392 = vmatprep.subr.bf16.mxu0 0
    %393 = vmatpush1.bf16.msra.mxu0 0
    %394 = vmatprep.subr.bf16.mxu0 0
    %395 = vmatpush1.bf16.msra.mxu0 0
    %396 = vmatprep.subr.bf16.mxu0 0
    %397 = vmatpush1.bf16.msra.mxu0 0
    %398 = vmatprep.subr.bf16.mxu0 0
    %399 = vmatpush1.bf16.msra.mxu0 0
    %400 = vmatprep.subr.bf16.mxu0 0
    %401 = vmatpush1.bf16.msra.mxu0 0
    %402 = vmatprep.subr.bf16.mxu0 0
    %403 = vmatpush1.bf16.msra.mxu0 0
    %404 = vmatprep.mubr.bf16.mxu0 0
    %405 = vmatmul.mubr.bf16.gmra.mrb[0].mxu0 %v322
    %v406 = vpop.f32.mrb[0].mxu0
    %v407 = vadd.f32 0.0, %v406
    %v408 = vpop.f32.mrb[0].mxu0
    %v409 = vpop.f32.mrb[0].mxu0
    %v410 = vadd.f32 0.0, %v409
    %v411 = vpop.f32.mrb[0].mxu0
    %412 = vdwg.mxu0
    %v413 = vadd.f32 %v294, %v407
    %v414 = vadd.f32 %v297, %v410
    %v415 = vadd.f32 %v413, %v414
    %v416 = vrot.slane %v415, 4
    %v417 = vadd.f32 %v415, %v416
    %v418 = vrot.slane %v417, 2
    %v419 = vadd.f32 %v417, %v418
    %v420 = vrot.slane %v419, 1
    %v421 = vadd.f32 %v419, %v420
    %v422 = vmul.f32 %v413, %v413
    %v423 = vmul.f32 %v414, %v414
    %v424 = vadd.f32 %v422, %v423
    %v425 = vrot.slane %v424, 4
    %v426 = vadd.f32 %v424, %v425
    %v427 = vrot.slane %v426, 2
    %v428 = vadd.f32 %v426, %v427
    %v429 = vrot.slane %v428, 1
    %v430 = vadd.f32 %v428, %v429
    %vm431 = vcmask 1040384
    %v432 = vsel %vm431, %v421, %v430
    %v433 = vld [vmem:[#allocation8] sm:$0xff]
    %v434 = vld [vmem:[#allocation8 + $0x8] sm:$0xff]
    %v435 = vld [vmem:[#allocation8 + $0x10] sm:$0xff]
    %v436 = vld [vmem:[#allocation8 + $0x18] sm:$0xff]
    %v437 = vld [vmem:[#allocation8 + $0x20] sm:$0xff]
    %v438 = vld [vmem:[#allocation8 + $0x28] sm:$0xff]
    %v439 = vld [vmem:[#allocation8 + $0x30] sm:$0xff]
    %v440 = vld [vmem:[#allocation8 + $0x38] sm:$0xff]
    %v441 = vld [vmem:[#allocation8 + $0x40] sm:$0xff]
    %v442 = vld [vmem:[#allocation8 + $0x48] sm:$0xff]
    %v443 = vld [vmem:[#allocation8 + $0x50] sm:$0xff]
    %v444 = vld [vmem:[#allocation8 + $0x58] sm:$0xff]
    %v445 = vld [vmem:[#allocation8 + $0x60] sm:$0xff]
    %v446 = vld [vmem:[#allocation8 + $0x68] sm:$0xff]
    %v447 = vld [vmem:[#allocation8 + $0x70] sm:$0xff]
    %v448 = vld [vmem:[#allocation8 + $0x78] sm:$0xff]
    %449 = vmatprep.subr.mxu0 0.0
    %450 = vmatpush1.msra.mxu0 %v433
    %451 = vmatprep.subr.mxu0 0.0
    %452 = vmatpush1.msra.mxu0 %v434
    %453 = vmatprep.subr.mxu0 0.0
    %454 = vmatpush1.msra.mxu0 %v435
    %455 = vmatprep.subr.mxu0 0.0
    %456 = vmatpush1.msra.mxu0 %v436
    %457 = vmatprep.subr.mxu0 0.0
    %458 = vmatpush1.msra.mxu0 %v437
    %459 = vmatprep.subr.mxu0 0.0
    %460 = vmatpush1.msra.mxu0 %v438
    %461 = vmatprep.subr.mxu0 0.0
    %462 = vmatpush1.msra.mxu0 %v439
    %463 = vmatprep.subr.mxu0 0.0
    %464 = vmatpush1.msra.mxu0 %v440
    %465 = vmatprep.subr.mxu0 0.0
    %466 = vmatpush1.msra.mxu0 %v441
    %467 = vmatprep.subr.mxu0 0.0
    %468 = vmatpush1.msra.mxu0 %v442
    %469 = vmatprep.subr.mxu0 0.0
    %470 = vmatpush1.msra.mxu0 %v443
    %471 = vmatprep.subr.mxu0 0.0
    %472 = vmatpush1.msra.mxu0 %v444
    %473 = vmatprep.subr.mxu0 0.0
    %474 = vmatpush1.msra.mxu0 %v445
    %475 = vmatprep.subr.mxu0 0.0
    %476 = vmatpush1.msra.mxu0 %v446
    %477 = vmatprep.subr.mxu0 0.0
    %478 = vmatpush1.msra.mxu0 %v447
    %479 = vmatprep.subr.mxu0 0.0
    %480 = vmatpush1.msra.mxu0 %v448
    %481 = vmatprep.subr.mxu0 0.0
    %482 = vmatpush1.msra.mxu0 0.0
    %483 = vmatprep.subr.mxu0 0.0
    %484 = vmatpush1.msra.mxu0 0.0
    %485 = vmatprep.subr.mxu0 0.0
    %486 = vmatpush1.msra.mxu0 0.0
    %487 = vmatprep.subr.mxu0 0.0
    %488 = vmatpush1.msra.mxu0 0.0
    %489 = vmatprep.subr.mxu0 0.0
    %490 = vmatpush1.msra.mxu0 0.0
    %491 = vmatprep.subr.mxu0 0.0
    %492 = vmatpush1.msra.mxu0 0.0
    %493 = vmatprep.subr.mxu0 0.0
    %494 = vmatpush1.msra.mxu0 0.0
    %495 = vmatprep.subr.mxu0 0.0
    %496 = vmatpush1.msra.mxu0 0.0
    %497 = vmatprep.subr.mxu0 0.0
    %498 = vmatpush1.msra.mxu0 0.0
    %499 = vmatprep.subr.mxu0 0.0
    %500 = vmatpush1.msra.mxu0 0.0
    %501 = vmatprep.subr.mxu0 0.0
    %502 = vmatpush1.msra.mxu0 0.0
    %503 = vmatprep.subr.mxu0 0.0
    %504 = vmatpush1.msra.mxu0 0.0
    %505 = vmatprep.subr.mxu0 0.0
    %506 = vmatpush1.msra.mxu0 0.0
    %507 = vmatprep.subr.mxu0 0.0
    %508 = vmatpush1.msra.mxu0 0.0
    %509 = vmatprep.subr.mxu0 0.0
    %510 = vmatpush1.msra.mxu0 0.0
    %511 = vmatprep.subr.mxu0 0.0
    %512 = vmatpush1.msra.mxu0 0.0
    %513 = vmatprep.mubr.f32.mxu0 0.0
    %514 = vmatmul.mubr.f32.gmra.mrb[0].mxu0 %v432
    %v515 = vpop.f32.mrb[0].mxu0
    %v516 = vadd.f32 0.0, %v515
    %v517 = vpop.f32.mrb[0].mxu0
    %518 = vdwg.mxu0
    %v519 = vmul.f32 %v516, 0.00390625
    %v520 = vmul.f32 %v519, %v519
    %v522 = vrot.slane %v520, 7
    %v524 = vsub.f32 %v519, %v522
    %v525 = vmax.f32 %v524, 0.0
    %v526 = vadd.f32 %v525, 1e-05
    %v527 = vrsqrt.pop %v526
    %v529 = vrot.slane %v527, 1
    %v531 = vmul.f32 %v60, %v529
    %v532 = vmul.f32 %v519, %v531
    %v533 = vsub.f32 %v61, %v532
    %v534 = vlaneseq
    %v535 = vshrl.u32 %v534, 7
    %v536 = vsub.s32 0, %v535
    %v537 = vrot.slane %v531, %v536
    %v538 = vmul.f32 %v413, %v537
    %v539 = vmul.f32 %v414, %v537
    %v540 = vlaneseq
    %v541 = vshrl.u32 %v540, 7
    %v542 = vsub.s32 0, %v541
    %v543 = vrot.slane %v533, %v542
    %v544 = vadd.f32 %v538, %v543
    %v545 = vadd.f32 %v539, %v543
    %v546 = vmax.f32 %v544, 0.0
    %v547 = vmax.f32 %v545, 0.0
    %548 = vst [vmem:[#allocation2 + $0x1] sm:$0xff] %v546
    %549 = vst [vmem:[#allocation2 + $0x9] sm:$0xff] %v547
    %v550 = vld [vmem:[#allocation2] sm:$0xff]
    %v551 = vld [vmem:[#allocation2 + $0x8] sm:$0xff]
    %v552 = vld [vmem:[#allocation2 + $0x10] sm:$0x3]
    %v553 = vpack.c.bf16 %v551, %v550
    %v554 = vpack.c.bf16 %v552, %v552
    %s555 = scalar_lea.vmem [#allocation6], 192
    %v556 = vld [vmem:[%s555] sm:$0xf]
    %v557 = vld [vmem:[%s555 + $0x4] sm:$0xf]
    %v558 = vld [vmem:[%s555 + $0x8] sm:$0xf]
    %v559 = vld [vmem:[%s555 + $0xc] sm:$0xf]
    %v560 = vld [vmem:[%s555 + $0x10] sm:$0xf]
    %v561 = vld [vmem:[%s555 + $0x14] sm:$0xf]
    %v562 = vld [vmem:[%s555 + $0x18] sm:$0xf]
    %v563 = vld [vmem:[%s555 + $0x1c] sm:$0xf]
    %v564 = vld [vmem:[%s555 + $0x20] sm:$0xf]
    %v565 = vld [vmem:[%s555 + $0x24] sm:$0xf]
    %v566 = vld [vmem:[%s555 + $0x28] sm:$0xf]
    %v567 = vld [vmem:[%s555 + $0x2c] sm:$0xf]
    %v568 = vld [vmem:[%s555 + $0x30] sm:$0xf]
    %v569 = vld [vmem:[%s555 + $0x34] sm:$0xf]
    %v570 = vld [vmem:[%s555 + $0x38] sm:$0xf]
    %v571 = vld [vmem:[%s555 + $0x3c] sm:$0xf]
    %s572 = scalar_lea.vmem [#allocation6], 256
    %v573 = vld [vmem:[%s572] sm:$0xf]
    %v574 = vld [vmem:[%s572 + $0x4] sm:$0xf]
    %v575 = vld [vmem:[%s572 + $0x8] sm:$0xf]
    %v576 = vld [vmem:[%s572 + $0xc] sm:$0xf]
    %v577 = vld [vmem:[%s572 + $0x10] sm:$0xf]
    %v578 = vld [vmem:[%s572 + $0x14] sm:$0xf]
    %v579 = vld [vmem:[%s572 + $0x18] sm:$0xf]
    %v580 = vld [vmem:[%s572 + $0x1c] sm:$0xf]
    %v581 = vld [vmem:[%s572 + $0x20] sm:$0xf]
    %v582 = vld [vmem:[%s572 + $0x24] sm:$0xf]
    %v583 = vld [vmem:[%s572 + $0x28] sm:$0xf]
    %v584 = vld [vmem:[%s572 + $0x2c] sm:$0xf]
    %v585 = vld [vmem:[%s572 + $0x30] sm:$0xf]
    %v586 = vld [vmem:[%s572 + $0x34] sm:$0xf]
    %v587 = vld [vmem:[%s572 + $0x38] sm:$0xf]
    %v588 = vld [vmem:[%s572 + $0x3c] sm:$0xf]
    %v590 = vshrl.u32 %v553, 16
    %v592 = vshll.u32 %v553, 16
    %v594 = vrot.slane %v592, 1
    %v595 = vor.u32 %v590, %v594
    %v597 = vshll.u32 %v554, 16
    %v599 = vrot.slane %v597, 1
    %v600 = vsel %vm108, %v595, %v599
    %v618 = vunpack.c.l.b16 %v573
    %v619 = vunpack.c.l.b16 %v574
    %v620 = vunpack.c.l.b16 %v575
    %v621 = vunpack.c.l.b16 %v576
    %v622 = vunpack.c.l.b16 %v577
    %v623 = vunpack.c.l.b16 %v578
    %v624 = vunpack.c.l.b16 %v579
    %v625 = vunpack.c.l.b16 %v580
    %v626 = vunpack.c.l.b16 %v581
    %v627 = vunpack.c.l.b16 %v582
    %v628 = vunpack.c.l.b16 %v583
    %v629 = vunpack.c.l.b16 %v584
    %v630 = vunpack.c.l.b16 %v585
    %v631 = vunpack.c.l.b16 %v586
    %v632 = vunpack.c.l.b16 %v587
    %v633 = vunpack.c.l.b16 %v588
    %v634 = vpack.c.b16 %v619, %v618
    %v635 = vpack.c.b16 %v621, %v620
    %v636 = vpack.c.b16 %v623, %v622
    %v637 = vpack.c.b16 %v625, %v624
    %v638 = vpack.c.b16 %v627, %v626
    %v639 = vpack.c.b16 %v629, %v628
    %v640 = vpack.c.b16 %v631, %v630
    %v641 = vpack.c.b16 %v633, %v632
    %650 = vmatprep.subr.bf16.mxu0 0
    %651 = vmatpush1.bf16.msra.mxu0 %v634
    %652 = vmatprep.subr.bf16.mxu0 0
    %653 = vmatpush1.bf16.msra.mxu0 %v635
    %654 = vmatprep.subr.bf16.mxu0 0
    %655 = vmatpush1.bf16.msra.mxu0 %v636
    %656 = vmatprep.subr.bf16.mxu0 0
    %657 = vmatpush1.bf16.msra.mxu0 %v637
    %658 = vmatprep.subr.bf16.mxu0 0
    %659 = vmatpush1.bf16.msra.mxu0 %v638
    %660 = vmatprep.subr.bf16.mxu0 0
    %661 = vmatpush1.bf16.msra.mxu0 %v639
    %662 = vmatprep.subr.bf16.mxu0 0
    %663 = vmatpush1.bf16.msra.mxu0 %v640
    %664 = vmatprep.subr.bf16.mxu0 0
    %665 = vmatpush1.bf16.msra.mxu0 %v641
    %666 = vmatprep.subr.bf16.mxu0 0
    %667 = vmatpush1.bf16.msra.mxu0 0
    %668 = vmatprep.subr.bf16.mxu0 0
    %669 = vmatpush1.bf16.msra.mxu0 0
    %670 = vmatprep.subr.bf16.mxu0 0
    %671 = vmatpush1.bf16.msra.mxu0 0
    %672 = vmatprep.subr.bf16.mxu0 0
    %673 = vmatpush1.bf16.msra.mxu0 0
    %674 = vmatprep.subr.bf16.mxu0 0
    %675 = vmatpush1.bf16.msra.mxu0 0
    %676 = vmatprep.subr.bf16.mxu0 0
    %677 = vmatpush1.bf16.msra.mxu0 0
    %678 = vmatprep.subr.bf16.mxu0 0
    %679 = vmatpush1.bf16.msra.mxu0 0
    %680 = vmatprep.subr.bf16.mxu0 0
    %681 = vmatpush1.bf16.msra.mxu0 0
    %682 = vmatprep.mubr.bf16.mxu0 0
    %683 = vmatmul.mubr.bf16.gmra.mrb[0].mxu0 %v600
    %v684 = vpop.f32.mrb[0].mxu0
    %v685 = vadd.f32 0.0, %v684
    %v686 = vpop.f32.mrb[0].mxu0
    %v687 = vpop.f32.mrb[0].mxu0
    %v688 = vadd.f32 0.0, %v687
    %v689 = vpop.f32.mrb[0].mxu0
    %690 = vdwg.mxu0
    %v707 = vunpack.c.l.b16 %v556
    %v708 = vunpack.c.l.b16 %v557
    %v709 = vunpack.c.l.b16 %v558
    %v710 = vunpack.c.l.b16 %v559
    %v711 = vunpack.c.l.b16 %v560
    %v712 = vunpack.c.l.b16 %v561
    %v713 = vunpack.c.l.b16 %v562
    %v714 = vunpack.c.l.b16 %v563
    %v715 = vunpack.c.l.b16 %v564
    %v716 = vunpack.c.l.b16 %v565
    %v717 = vunpack.c.l.b16 %v566
    %v718 = vunpack.c.l.b16 %v567
    %v719 = vunpack.c.l.b16 %v568
    %v720 = vunpack.c.l.b16 %v569
    %v721 = vunpack.c.l.b16 %v570
    %v722 = vunpack.c.l.b16 %v571
    %v723 = vpack.c.b16 %v708, %v707
    %v724 = vpack.c.b16 %v710, %v709
    %v725 = vpack.c.b16 %v712, %v711
    %v726 = vpack.c.b16 %v714, %v713
    %v727 = vpack.c.b16 %v716, %v715
    %v728 = vpack.c.b16 %v718, %v717
    %v729 = vpack.c.b16 %v720, %v719
    %v730 = vpack.c.b16 %v722, %v721
    %739 = vmatprep.subr.bf16.mxu0 0
    %740 = vmatpush1.bf16.msra.mxu0 %v723
    %741 = vmatprep.subr.bf16.mxu0 0
    %742 = vmatpush1.bf16.msra.mxu0 %v724
    %743 = vmatprep.subr.bf16.mxu0 0
    %744 = vmatpush1.bf16.msra.mxu0 %v725
    %745 = vmatprep.subr.bf16.mxu0 0
    %746 = vmatpush1.bf16.msra.mxu0 %v726
    %747 = vmatprep.subr.bf16.mxu0 0
    %748 = vmatpush1.bf16.msra.mxu0 %v727
    %749 = vmatprep.subr.bf16.mxu0 0
    %750 = vmatpush1.bf16.msra.mxu0 %v728
    %751 = vmatprep.subr.bf16.mxu0 0
    %752 = vmatpush1.bf16.msra.mxu0 %v729
    %753 = vmatprep.subr.bf16.mxu0 0
    %754 = vmatpush1.bf16.msra.mxu0 %v730
    %755 = vmatprep.subr.bf16.mxu0 0
    %756 = vmatpush1.bf16.msra.mxu0 0
    %757 = vmatprep.subr.bf16.mxu0 0
    %758 = vmatpush1.bf16.msra.mxu0 0
    %759 = vmatprep.subr.bf16.mxu0 0
    %760 = vmatpush1.bf16.msra.mxu0 0
    %761 = vmatprep.subr.bf16.mxu0 0
    %762 = vmatpush1.bf16.msra.mxu0 0
    %763 = vmatprep.subr.bf16.mxu0 0
    %764 = vmatpush1.bf16.msra.mxu0 0
    %765 = vmatprep.subr.bf16.mxu0 0
    %766 = vmatpush1.bf16.msra.mxu0 0
    %767 = vmatprep.subr.bf16.mxu0 0
    %768 = vmatpush1.bf16.msra.mxu0 0
    %769 = vmatprep.subr.bf16.mxu0 0
    %770 = vmatpush1.bf16.msra.mxu0 0
    %771 = vmatprep.mubr.bf16.mxu0 0
    %772 = vmatmul.mubr.bf16.gmra.mrb[0].mxu0 %v553
    %v773 = vpop.f32.mrb[0].mxu0
    %v774 = vadd.f32 %v685, %v773
    %v775 = vpop.f32.mrb[0].mxu0
    %v776 = vpop.f32.mrb[0].mxu0
    %v777 = vadd.f32 %v688, %v776
    %v778 = vpop.f32.mrb[0].mxu0
    %779 = vdwg.mxu0
    %s780 = scalar_lea.vmem [#allocation6], 320
    %v781 = vld [vmem:[%s780] sm:$0xf]
    %v782 = vld [vmem:[%s780 + $0x4] sm:$0xf]
    %v783 = vld [vmem:[%s780 + $0x8] sm:$0xf]
    %v784 = vld [vmem:[%s780 + $0xc] sm:$0xf]
    %v785 = vld [vmem:[%s780 + $0x10] sm:$0xf]
    %v786 = vld [vmem:[%s780 + $0x14] sm:$0xf]
    %v787 = vld [vmem:[%s780 + $0x18] sm:$0xf]
    %v788 = vld [vmem:[%s780 + $0x1c] sm:$0xf]
    %v789 = vld [vmem:[%s780 + $0x20] sm:$0xf]
    %v790 = vld [vmem:[%s780 + $0x24] sm:$0xf]
    %v791 = vld [vmem:[%s780 + $0x28] sm:$0xf]
    %v792 = vld [vmem:[%s780 + $0x2c] sm:$0xf]
    %v793 = vld [vmem:[%s780 + $0x30] sm:$0xf]
    %v794 = vld [vmem:[%s780 + $0x34] sm:$0xf]
    %v795 = vld [vmem:[%s780 + $0x38] sm:$0xf]
    %v796 = vld [vmem:[%s780 + $0x3c] sm:$0xf]
    %v799 = vrot.slane %v553, 1
    %v800 = vrot.slane %v554, 1
    %v801 = vsel %vm319, %v799, %v800
    %v819 = vunpack.c.l.b16 %v781
    %v820 = vunpack.c.l.b16 %v782
    %v821 = vunpack.c.l.b16 %v783
    %v822 = vunpack.c.l.b16 %v784
    %v823 = vunpack.c.l.b16 %v785
    %v824 = vunpack.c.l.b16 %v786
    %v825 = vunpack.c.l.b16 %v787
    %v826 = vunpack.c.l.b16 %v788
    %v827 = vunpack.c.l.b16 %v789
    %v828 = vunpack.c.l.b16 %v790
    %v829 = vunpack.c.l.b16 %v791
    %v830 = vunpack.c.l.b16 %v792
    %v831 = vunpack.c.l.b16 %v793
    %v832 = vunpack.c.l.b16 %v794
    %v833 = vunpack.c.l.b16 %v795
    %v834 = vunpack.c.l.b16 %v796
    %v835 = vpack.c.b16 %v820, %v819
    %v836 = vpack.c.b16 %v822, %v821
    %v837 = vpack.c.b16 %v824, %v823
    %v838 = vpack.c.b16 %v826, %v825
    %v839 = vpack.c.b16 %v828, %v827
    %v840 = vpack.c.b16 %v830, %v829
    %v841 = vpack.c.b16 %v832, %v831
    %v842 = vpack.c.b16 %v834, %v833
    %851 = vmatprep.subr.bf16.mxu0 0
    %852 = vmatpush1.bf16.msra.mxu0 %v835
    %853 = vmatprep.subr.bf16.mxu0 0
    %854 = vmatpush1.bf16.msra.mxu0 %v836
    %855 = vmatprep.subr.bf16.mxu0 0
    %856 = vmatpush1.bf16.msra.mxu0 %v837
    %857 = vmatprep.subr.bf16.mxu0 0
    %858 = vmatpush1.bf16.msra.mxu0 %v838
    %859 = vmatprep.subr.bf16.mxu0 0
    %860 = vmatpush1.bf16.msra.mxu0 %v839
    %861 = vmatprep.subr.bf16.mxu0 0
    %862 = vmatpush1.bf16.msra.mxu0 %v840
    %863 = vmatprep.subr.bf16.mxu0 0
    %864 = vmatpush1.bf16.msra.mxu0 %v841
    %865 = vmatprep.subr.bf16.mxu0 0
    %866 = vmatpush1.bf16.msra.mxu0 %v842
    %867 = vmatprep.subr.bf16.mxu0 0
    %868 = vmatpush1.bf16.msra.mxu0 0
    %869 = vmatprep.subr.bf16.mxu0 0
    %870 = vmatpush1.bf16.msra.mxu0 0
    %871 = vmatprep.subr.bf16.mxu0 0
    %872 = vmatpush1.bf16.msra.mxu0 0
    %873 = vmatprep.subr.bf16.mxu0 0
    %874 = vmatpush1.bf16.msra.mxu0 0
    %875 = vmatprep.subr.bf16.mxu0 0
    %876 = vmatpush1.bf16.msra.mxu0 0
    %877 = vmatprep.subr.bf16.mxu0 0
    %878 = vmatpush1.bf16.msra.mxu0 0
    %879 = vmatprep.subr.bf16.mxu0 0
    %880 = vmatpush1.bf16.msra.mxu0 0
    %881 = vmatprep.subr.bf16.mxu0 0
    %882 = vmatpush1.bf16.msra.mxu0 0
    %883 = vmatprep.mubr.bf16.mxu0 0
    %884 = vmatmul.mubr.bf16.gmra.mrb[0].mxu0 %v801
    %v885 = vpop.f32.mrb[0].mxu0
    %v886 = vadd.f32 0.0, %v885
    %v887 = vpop.f32.mrb[0].mxu0
    %v888 = vpop.f32.mrb[0].mxu0
    %v889 = vadd.f32 0.0, %v888
    %v890 = vpop.f32.mrb[0].mxu0
    %891 = vdwg.mxu0
    %v892 = vadd.f32 %v774, %v886
    %v893 = vadd.f32 %v777, %v889
    %v894 = vadd.f32 %v892, %v893
    %v895 = vrot.slane %v894, 4
    %v896 = vadd.f32 %v894, %v895
    %v897 = vrot.slane %v896, 2
    %v898 = vadd.f32 %v896, %v897
    %v899 = vrot.slane %v898, 1
    %v900 = vadd.f32 %v898, %v899
    %v901 = vmul.f32 %v892, %v892
    %v902 = vmul.f32 %v893, %v893
    %v903 = vadd.f32 %v901, %v902
    %v904 = vrot.slane %v903, 4
    %v905 = vadd.f32 %v903, %v904
    %v906 = vrot.slane %v905, 2
    %v907 = vadd.f32 %v905, %v906
    %v908 = vrot.slane %v907, 1
    %v909 = vadd.f32 %v907, %v908
    %v910 = vsel %vm431, %v900, %v909
    %v911 = vld [vmem:[#allocation8] sm:$0xff]
    %v912 = vld [vmem:[#allocation8 + $0x8] sm:$0xff]
    %v913 = vld [vmem:[#allocation8 + $0x10] sm:$0xff]
    %v914 = vld [vmem:[#allocation8 + $0x18] sm:$0xff]
    %v915 = vld [vmem:[#allocation8 + $0x20] sm:$0xff]
    %v916 = vld [vmem:[#allocation8 + $0x28] sm:$0xff]
    %v917 = vld [vmem:[#allocation8 + $0x30] sm:$0xff]
    %v918 = vld [vmem:[#allocation8 + $0x38] sm:$0xff]
    %v919 = vld [vmem:[#allocation8 + $0x40] sm:$0xff]
    %v920 = vld [vmem:[#allocation8 + $0x48] sm:$0xff]
    %v921 = vld [vmem:[#allocation8 + $0x50] sm:$0xff]
    %v922 = vld [vmem:[#allocation8 + $0x58] sm:$0xff]
    %v923 = vld [vmem:[#allocation8 + $0x60] sm:$0xff]
    %v924 = vld [vmem:[#allocation8 + $0x68] sm:$0xff]
    %v925 = vld [vmem:[#allocation8 + $0x70] sm:$0xff]
    %v926 = vld [vmem:[#allocation8 + $0x78] sm:$0xff]
    %927 = vmatprep.subr.mxu0 0.0
    %928 = vmatpush1.msra.mxu0 %v911
    %929 = vmatprep.subr.mxu0 0.0
    %930 = vmatpush1.msra.mxu0 %v912
    %931 = vmatprep.subr.mxu0 0.0
    %932 = vmatpush1.msra.mxu0 %v913
    %933 = vmatprep.subr.mxu0 0.0
    %934 = vmatpush1.msra.mxu0 %v914
    %935 = vmatprep.subr.mxu0 0.0
    %936 = vmatpush1.msra.mxu0 %v915
    %937 = vmatprep.subr.mxu0 0.0
    %938 = vmatpush1.msra.mxu0 %v916
    %939 = vmatprep.subr.mxu0 0.0
    %940 = vmatpush1.msra.mxu0 %v917
    %941 = vmatprep.subr.mxu0 0.0
    %942 = vmatpush1.msra.mxu0 %v918
    %943 = vmatprep.subr.mxu0 0.0
    %944 = vmatpush1.msra.mxu0 %v919
    %945 = vmatprep.subr.mxu0 0.0
    %946 = vmatpush1.msra.mxu0 %v920
    %947 = vmatprep.subr.mxu0 0.0
    %948 = vmatpush1.msra.mxu0 %v921
    %949 = vmatprep.subr.mxu0 0.0
    %950 = vmatpush1.msra.mxu0 %v922
    %951 = vmatprep.subr.mxu0 0.0
    %952 = vmatpush1.msra.mxu0 %v923
    %953 = vmatprep.subr.mxu0 0.0
    %954 = vmatpush1.msra.mxu0 %v924
    %955 = vmatprep.subr.mxu0 0.0
    %956 = vmatpush1.msra.mxu0 %v925
    %957 = vmatprep.subr.mxu0 0.0
    %958 = vmatpush1.msra.mxu0 %v926
    %959 = vmatprep.subr.mxu0 0.0
    %960 = vmatpush1.msra.mxu0 0.0
    %961 = vmatprep.subr.mxu0 0.0
    %962 = vmatpush1.msra.mxu0 0.0
    %963 = vmatprep.subr.mxu0 0.0
    %964 = vmatpush1.msra.mxu0 0.0
    %965 = vmatprep.subr.mxu0 0.0
    %966 = vmatpush1.msra.mxu0 0.0
    %967 = vmatprep.subr.mxu0 0.0
    %968 = vmatpush1.msra.mxu0 0.0
    %969 = vmatprep.subr.mxu0 0.0
    %970 = vmatpush1.msra.mxu0 0.0
    %971 = vmatprep.subr.mxu0 0.0
    %972 = vmatpush1.msra.mxu0 0.0
    %973 = vmatprep.subr.mxu0 0.0
    %974 = vmatpush1.msra.mxu0 0.0
    %975 = vmatprep.subr.mxu0 0.0
    %976 = vmatpush1.msra.mxu0 0.0
    %977 = vmatprep.subr.mxu0 0.0
    %978 = vmatpush1.msra.mxu0 0.0
    %979 = vmatprep.subr.mxu0 0.0
    %980 = vmatpush1.msra.mxu0 0.0
    %981 = vmatprep.subr.mxu0 0.0
    %982 = vmatpush1.msra.mxu0 0.0
    %983 = vmatprep.subr.mxu0 0.0
    %984 = vmatpush1.msra.mxu0 0.0
    %985 = vmatprep.subr.mxu0 0.0
    %986 = vmatpush1.msra.mxu0 0.0
    %987 = vmatprep.subr.mxu0 0.0
    %988 = vmatpush1.msra.mxu0 0.0
    %989 = vmatprep.subr.mxu0 0.0
    %990 = vmatpush1.msra.mxu0 0.0
    %991 = vmatprep.mubr.f32.mxu0 0.0
    %992 = vmatmul.mubr.f32.gmra.mrb[0].mxu0 %v910
    %v993 = vpop.f32.mrb[0].mxu0
    %v994 = vadd.f32 0.0, %v993
    %v995 = vpop.f32.mrb[0].mxu0
    %996 = vdwg.mxu0
    %v997 = vmul.f32 %v994, 0.00390625
    %v998 = vmul.f32 %v997, %v997
    %v1000 = vrot.slane %v998, 7
    %v1002 = vsub.f32 %v997, %v1000
    %v1003 = vmax.f32 %v1002, 0.0
    %v1004 = vadd.f32 %v1003, 1e-05
    %v1005 = vrsqrt.pop %v1004
    %v1007 = vrot.slane %v1005, 1
    %v1009 = vmul.f32 %v62, %v1007
    %v1010 = vmul.f32 %v997, %v1009
    %v1011 = vsub.f32 %v63, %v1010
    %v1012 = vlaneseq
    %v1013 = vshrl.u32 %v1012, 7
    %v1014 = vsub.s32 0, %v1013
    %v1015 = vrot.slane %v1009, %v1014
    %v1016 = vmul.f32 %v892, %v1015
    %v1017 = vmul.f32 %v893, %v1015
    %v1018 = vlaneseq
    %v1019 = vshrl.u32 %v1018, 7
    %v1020 = vsub.s32 0, %v1019
    %v1021 = vrot.slane %v1011, %v1020
    %v1022 = vadd.f32 %v1016, %v1021
    %v1023 = vadd.f32 %v1017, %v1021
    %v1024 = vld [vmem:[#allocation3] sm:$0xff]
    %v1025 = vld [vmem:[#allocation3 + $0x8] sm:$0xff]
    %v1026 = vadd.f32 %v1024, %v1022
    %v1027 = vadd.f32 %v1025, %v1023
    %1028 = vst [vmem:[#allocation9] sm:$0xff] %v1026
    %1029 = vst [vmem:[#allocation9 + $0x8] sm:$0xff] %v1027
    // Predicated region
    $region30: #{tpu_custom_call.1} parent=1 // pred_check
      _
    $region31: #{tpu_custom_call.1} parent=1 // pred_check_branch
      %1031 = sbr.rel (0) target = $region33
    $region32: #{tpu_custom_call.1} parent=1 // pred_region
      %s1033 = ssub.s32 256, 256
      %1034 = vsyncadd [#allocation5], %s1033
      %s1035 = sshll.u32 [#allocation9], 4
      %s1036 = int_to_ptr.vmem [resolvable:$true] %s1035
      %1041 = dma.vmem_to_hbm [thread:$0]  %s1036, 256, %s4, [#allocation5], 128, 128, 8
    $region33: #{tpu_custom_call.1} parent=1 // pred_fallthru
      _
    // Predicated region
    $region34: #{tpu_custom_call.1} parent=1 // pred_check
      _
    $region35: #{tpu_custom_call.1} parent=1 // pred_check_branch
      %1043 = sbr.rel (0) target = $region37
    $region36: #{tpu_custom_call.1} parent=1 // pred_region
      %1044 = dma.done [#allocation5], 256
    $region37: #{tpu_custom_call.1} parent=1 // pred_fallthru
      _
    %1045 = vsyncpa [#allocation4], 1
    %1046 = vsyncpa [#allocation7], 1
    %1047 = vsyncpa [#allocation5], 1

</llo_original>
